<compile_context>
chip_gen: v7x
topology: tpu7x:2x2x1
jax: 0.10.0
libtpu: 0.0.40
codegen_flags: <defaults>
</compile_context>

<pallas_src>
import functools

import jax
import jax.numpy as jnp
from jax.experimental import pallas as pl
from jax.experimental.pallas import tpu as pltpu


LANES = 128                           # vreg lane width
ACC_ROWS = 8                          # vreg sublane height
SUB_ROWS = 1024                       # in-kernel compute chunk (bounds temporaries)
TILE_INPUT_BYTES = 4 * 1024 * 1024    # per-input per-pipeline-buffer DMA tile


def _num_core_splits():
    """2-way 'parallel' split only where it buys parallelism (v7x, megacore);
    on single-TensorCore v5e / v6e it would just be a serial loop + extra mask."""
    try:
        kind = jax.devices()[0].device_kind.lower()
    except Exception:
        return 1
    if ("lite" in kind) or ("v5e" in kind) or ("v6e" in kind):
        return 1           # v5e / v6e: single TensorCore
    return 2               # v7x (2 TC/chip) and megacore parts (v4 / v5p)


def _clamp_loss_kernel(x_ref, t_ref, out_nc_ref, out_c_ref, acc_nc_ref, acc_c_ref,
                       *, min_value, max_value, n_rows, tile_rows,
                       tiles_per_core, need_mask):
    c = pl.program_id(0)   # core-split index ("parallel")
    i = pl.program_id(1)   # row-tile index within this split ("arbitrary")

    @pl.when(i == 0)
    def _():
        acc_nc_ref[...] = jnp.zeros_like(acc_nc_ref)
        acc_c_ref[...] = jnp.zeros_like(acc_c_ref)

    tile_start = (c * tiles_per_core + i) * tile_rows
    sub_rows = min(SUB_ROWS, tile_rows)
    n_full = tile_rows // sub_rows
    rem = tile_rows - n_full * sub_rows      # multiple of ACC_ROWS

    def step(r0, rows, masked):
        x = x_ref[pl.ds(r0, rows), :]
        t = t_ref[pl.ds(r0, rows), :]
        # keep HBM traffic in the caller's dtype; compute in f32 after load
        if x.dtype != jnp.float32:
            x = x.astype(jnp.float32)
        if t.dtype != jnp.float32:
            t = t.astype(jnp.float32)
        if masked:
            row_ids = (tile_start + r0
                       + jax.lax.broadcasted_iota(jnp.int32, (rows, LANES), 0))
            valid = row_ids < n_rows
        d_nc = jnp.abs(x - t)
        if masked:
            d_nc = jnp.where(valid, d_nc, 0.0)
        acc_nc_ref[...] += jnp.sum(
            d_nc.reshape(rows // ACC_ROWS, ACC_ROWS, LANES), axis=0)
        d_c = jnp.abs(jnp.clip(x, min_value, max_value)
                      - jnp.clip(t, min_value, max_value))
        if masked:
            d_c = jnp.where(valid, d_c, 0.0)
        acc_c_ref[...] += jnp.sum(
            d_c.reshape(rows // ACC_ROWS, ACC_ROWS, LANES), axis=0)

    def accumulate(masked):
        if n_full == 1:
            step(0, sub_rows, masked)
        else:
            def body(j, carry):
                step(pl.multiple_of(j * sub_rows, sub_rows), sub_rows, masked)
                return carry
            jax.lax.fori_loop(0, n_full, body, None)
        if rem:
            step(n_full * sub_rows, rem, masked)

    if need_mask:
        # Only the (at most one per split) partial / out-of-range boundary tile
        # pays the iota/compare/select masking; full tiles stay on the lean path.
        is_full = (tile_start + tile_rows) <= n_rows

        @pl.when(is_full)
        def _():
            accumulate(masked=False)

        @pl.when(jnp.logical_not(is_full))
        def _():
            accumulate(masked=True)
    else:
        accumulate(masked=False)

    @pl.when(i == tiles_per_core - 1)
    def _():
        out_nc_ref[0] = acc_nc_ref[...]
        out_c_ref[0] = acc_c_ref[...]


def clamp_loss(x, t, *, min_value=0.0, max_value=1.0, eta=0.001):
    """ClampLoss(nn.L1Loss()) forward. x, t: same shape (e.g. NCHW)."""
    assert x.shape == t.shape
    n_elems = x.size

    xf = x.reshape(-1)
    tf = t.reshape(-1)

    # Kernel consumes a lane-dense (rows, 128) slab whose row count is a
    # multiple of 8 so every in-kernel reshape/reduce is layout-free; the
    # < 1024-element ragged tail is reduced in plain JAX.
    chunk = LANES * ACC_ROWS
    n_main = (n_elems // chunk) * chunk
    tail = n_elems - n_main

    noclip_sum = jnp.float32(0.0)
    clip_sum = jnp.float32(0.0)

    if n_main > 0:
        x2 = xf[:n_main].reshape(-1, LANES)
        t2 = tf[:n_main].reshape(-1, LANES)
        n_rows = n_main // LANES

        # byte-based tile: 4 MiB per input per pipeline buffer (bf16 gets 2x rows)
        itemsize = jnp.dtype(x.dtype).itemsize
        max_rows = max(ACC_ROWS, TILE_INPUT_BYTES // (LANES * itemsize))
        tile_rows = min(max_rows, n_rows)        # both multiples of 8

        n_tiles = pl.cdiv(n_rows, tile_rows)
        num_splits = min(_num_core_splits(), n_tiles)
        tiles_per_core = pl.cdiv(n_tiles, num_splits)
        need_mask = (num_splits * tiles_per_core * tile_rows) != n_rows

        def in_index_map(c, i):
            # clamp trailing (possibly empty) tiles of the 2nd split so they never
            # index past the array; their contribution is fully masked in-kernel
            blk = jnp.minimum(c * tiles_per_core + i, n_tiles - 1)
            return (blk, 0)

        kernel = functools.partial(
            _clamp_loss_kernel,
            min_value=float(min_value), max_value=float(max_value),
            n_rows=n_rows, tile_rows=tile_rows,
            tiles_per_core=tiles_per_core, need_mask=need_mask,
        )

        compiler_kwargs = dict(
            dimension_semantics=("parallel", "arbitrary"),
            vmem_limit_bytes=48 * 1024 * 1024,
        )
        if tail:
            # let the prefix slice / reshape fuse into the pallas_call operands
            # instead of materializing full HBM copies of x and t
            compiler_kwargs["allow_input_fusion"] = [True, True]

        out_nc, out_c = pl.pallas_call(
            kernel,
            out_shape=(
                jax.ShapeDtypeStruct((num_splits, ACC_ROWS, LANES), jnp.float32),
                jax.ShapeDtypeStruct((num_splits, ACC_ROWS, LANES), jnp.float32),
            ),
            grid_spec=pltpu.PrefetchScalarGridSpec(
                num_scalar_prefetch=0,
                grid=(num_splits, tiles_per_core),
                in_specs=[
                    pl.BlockSpec((tile_rows, LANES), in_index_map),
                    pl.BlockSpec((tile_rows, LANES), in_index_map),
                ],
                out_specs=[
                    pl.BlockSpec((1, ACC_ROWS, LANES), lambda c, i: (c, 0, 0)),
                    pl.BlockSpec((1, ACC_ROWS, LANES), lambda c, i: (c, 0, 0)),
                ],
                scratch_shapes=[
                    pltpu.VMEM((ACC_ROWS, LANES), jnp.float32),
                    pltpu.VMEM((ACC_ROWS, LANES), jnp.float32),
                ],
            ),
            compiler_params=pltpu.CompilerParams(**compiler_kwargs),
        )(x2, t2)

        # single final cross-lane/sublane reduce on the tiny partial-sum blocks
        noclip_sum = noclip_sum + jnp.sum(out_nc)
        clip_sum = clip_sum + jnp.sum(out_c)

    if tail:   # < 1024 leftover elements: reduce in plain JAX
        xt = xf[n_main:].astype(jnp.float32)
        tt = tf[n_main:].astype(jnp.float32)
        noclip_sum = noclip_sum + jnp.sum(jnp.abs(xt - tt))
        clip_sum = clip_sum + jnp.sum(
            jnp.abs(jnp.clip(xt, min_value, max_value) - jnp.clip(tt, min_value, max_value)))

    noclip_loss = noclip_sum / n_elems   # mean |x - t|
    clip_loss = clip_sum / n_elems       # mean |clip(x) - clip(t)|
    return clip_loss + noclip_loss * eta


if __name__ == "__main__":
    key = jax.random.PRNGKey(0)
    k1, k2 = jax.random.split(key)
    # NCHW inputs, values outside [0, 1] so clamping actually matters
    x = jax.random.uniform(k1, (2, 4, 16, 16), jnp.float32, minval=-0.5, maxval=1.5)
    t = jax.random.uniform(k2, (2, 4, 16, 16), jnp.float32, minval=-0.5, maxval=1.5)

    loss = jax.block_until_ready(clamp_loss(x, t, min_value=0.0, max_value=1.0, eta=0.001))

    # reference check in plain JAX (L1Loss with mean reduction)
    ref_noclip = jnp.mean(jnp.abs(x - t))
    ref_clip = jnp.mean(jnp.abs(jnp.clip(x, 0.0, 1.0) - jnp.clip(t, 0.0, 1.0)))
    ref = ref_clip + ref_noclip * 0.001
    assert jnp.allclose(loss, ref, rtol=1e-5, atol=1e-6), (loss, ref)

    print("KERNEL_OK")
</pallas_src>

<mosaic_0001>
module attributes {stable_mosaic.version = 11 : i64} {
  func.func @_clamp_loss_kernel(%arg0: i32, %arg1: i32, %arg2: memref<16x128xf32, #tpu.memory_space<vmem>>, %arg3: memref<16x128xf32, #tpu.memory_space<vmem>>, %arg4: memref<1x8x128xf32, #tpu.memory_space<vmem>>, %arg5: memref<1x8x128xf32, #tpu.memory_space<vmem>>, %arg6: memref<8x128xf32, #tpu.memory_space<vmem>>, %arg7: memref<8x128xf32, #tpu.memory_space<vmem>>) attributes {dimension_semantics = [#tpu.dimension_semantics<parallel>, #tpu.dimension_semantics<arbitrary>], iteration_bounds = array<i64: 1, 1>, scalar_prefetch = 0 : i64, scratch_operands = 2 : i64, tpu.core_type = #tpu.core_type<tc>, window_params = [{transform_indices = @transform_0, window_bounds = array<i64: 16, 128>}, {transform_indices = @transform_1, window_bounds = array<i64: 16, 128>}, {transform_indices = @transform_2, window_bounds = array<i64: 1, 8, 128>}, {transform_indices = @transform_3, window_bounds = array<i64: 1, 8, 128>}]} {
    %c0_i32 = arith.constant 0 : i32
    %0 = arith.cmpi eq, %arg1, %c0_i32 : i32
    %1 = arith.extui %0 : i1 to i32
    %c0_i32_0 = arith.constant 0 : i32
    %2 = arith.cmpi ne, %1, %c0_i32_0 : i32
    scf.if %2 {
      %cst_19 = arith.constant 0.000000e+00 : f32
      %30 = vector.broadcast %cst_19 : f32 to vector<8x128xf32>
      %c0_20 = arith.constant 0 : index
      %c0_21 = arith.constant 0 : index
      %31 = vector.load %arg6[%c0_20, %c0_21] : memref<8x128xf32, #tpu.memory_space<vmem>>, vector<8x128xf32>
      tpu.vector_store %arg6[%c0_20, %c0_21], %30 {strides = array<i32>} : memref<8x128xf32, #tpu.memory_space<vmem>>, vector<8x128xf32>,
      %cst_22 = arith.constant 0.000000e+00 : f32
      %32 = vector.broadcast %cst_22 : f32 to vector<8x128xf32>
      %c0_23 = arith.constant 0 : index
      %c0_24 = arith.constant 0 : index
      %33 = vector.load %arg7[%c0_23, %c0_24] : memref<8x128xf32, #tpu.memory_space<vmem>>, vector<8x128xf32>
      tpu.vector_store %arg7[%c0_23, %c0_24], %32 {strides = array<i32>} : memref<8x128xf32, #tpu.memory_space<vmem>>, vector<8x128xf32>,
    } else {
    }
    %c0 = arith.constant 0 : index
    %c0_1 = arith.constant 0 : index
    %3 = vector.load %arg2[%c0, %c0_1] : memref<16x128xf32, #tpu.memory_space<vmem>>, vector<16x128xf32>
    %c0_2 = arith.constant 0 : index
    %c0_3 = arith.constant 0 : index
    %4 = vector.load %arg3[%c0_2, %c0_3] : memref<16x128xf32, #tpu.memory_space<vmem>>, vector<16x128xf32>
    %5 = arith.subf %3, %4 : vector<16x128xf32>
    %6 = math.absf %5 : vector<16x128xf32>
    %c0_4 = arith.constant 0 : index
    %c0_5 = arith.constant 0 : index
    %7 = vector.load %arg6[%c0_4, %c0_5] : memref<8x128xf32, #tpu.memory_space<vmem>>, vector<8x128xf32>
    %8 = vector.shape_cast %6 : vector<16x128xf32> to vector<2x8x128xf32>
    %cst = arith.constant dense<0.000000e+00> : vector<8x128xf32>
    %9 = vector.multi_reduction <add>, %8, %cst [0] : vector<2x8x128xf32> to vector<8x128xf32>
    %10 = arith.addf %7, %9 : vector<8x128xf32>
    %c0_6 = arith.constant 0 : index
    %c0_7 = arith.constant 0 : index
    %11 = vector.load %arg6[%c0_6, %c0_7] : memref<8x128xf32, #tpu.memory_space<vmem>>, vector<8x128xf32>
    tpu.vector_store %arg6[%c0_6, %c0_7], %10 {strides = array<i32>} : memref<8x128xf32, #tpu.memory_space<vmem>>, vector<8x128xf32>,
    %cst_8 = arith.constant 0.000000e+00 : f32
    %cst_9 = arith.constant 1.000000e+00 : f32
    %12 = vector.broadcast %cst_8 : f32 to vector<16x128xf32>
    %13 = arith.maximumf %12, %3 : vector<16x128xf32>
    %14 = vector.broadcast %cst_9 : f32 to vector<16x128xf32>
    %15 = arith.minimumf %14, %13 : vector<16x128xf32>
    %cst_10 = arith.constant 0.000000e+00 : f32
    %cst_11 = arith.constant 1.000000e+00 : f32
    %16 = vector.broadcast %cst_10 : f32 to vector<16x128xf32>
    %17 = arith.maximumf %16, %4 : vector<16x128xf32>
    %18 = vector.broadcast %cst_11 : f32 to vector<16x128xf32>
    %19 = arith.minimumf %18, %17 : vector<16x128xf32>
    %20 = arith.subf %15, %19 : vector<16x128xf32>
    %21 = math.absf %20 : vector<16x128xf32>
    %c0_12 = arith.constant 0 : index
    %c0_13 = arith.constant 0 : index
    %22 = vector.load %arg7[%c0_12, %c0_13] : memref<8x128xf32, #tpu.memory_space<vmem>>, vector<8x128xf32>
    %23 = vector.shape_cast %21 : vector<16x128xf32> to vector<2x8x128xf32>
    %cst_14 = arith.constant dense<0.000000e+00> : vector<8x128xf32>
    %24 = vector.multi_reduction <add>, %23, %cst_14 [0] : vector<2x8x128xf32> to vector<8x128xf32>
    %25 = arith.addf %22, %24 : vector<8x128xf32>
    %c0_15 = arith.constant 0 : index
    %c0_16 = arith.constant 0 : index
    %26 = vector.load %arg7[%c0_15, %c0_16] : memref<8x128xf32, #tpu.memory_space<vmem>>, vector<8x128xf32>
    tpu.vector_store %arg7[%c0_15, %c0_16], %25 {strides = array<i32>} : memref<8x128xf32, #tpu.memory_space<vmem>>, vector<8x128xf32>,
    %c0_i32_17 = arith.constant 0 : i32
    %27 = arith.cmpi eq, %arg1, %c0_i32_17 : i32
    %28 = arith.extui %27 : i1 to i32
    %c0_i32_18 = arith.constant 0 : i32
    %29 = arith.cmpi ne, %28, %c0_i32_18 : i32
    scf.if %29 {
      %c0_19 = arith.constant 0 : index
      %c0_20 = arith.constant 0 : index
      %30 = vector.load %arg6[%c0_19, %c0_20] : memref<8x128xf32, #tpu.memory_space<vmem>>, vector<8x128xf32>
      %c0_21 = arith.constant 0 : index
      %c0_22 = arith.constant 0 : index
      %c0_23 = arith.constant 0 : index
      %31 = vector.load %arg4[%c0_21, %c0_22, %c0_23] : memref<1x8x128xf32, #tpu.memory_space<vmem>>, vector<1x8x128xf32>
      %32 = vector.shape_cast %31 : vector<1x8x128xf32> to vector<8x128xf32>
      %33 = vector.shape_cast %30 : vector<8x128xf32> to vector<1x8x128xf32>
      tpu.vector_store %arg4[%c0_21, %c0_22, %c0_23], %33 {strides = array<i32>} : memref<1x8x128xf32, #tpu.memory_space<vmem>>, vector<1x8x128xf32>,
      %c0_24 = arith.constant 0 : index
      %c0_25 = arith.constant 0 : index
      %34 = vector.load %arg7[%c0_24, %c0_25] : memref<8x128xf32, #tpu.memory_space<vmem>>, vector<8x128xf32>
      %c0_26 = arith.constant 0 : index
      %c0_27 = arith.constant 0 : index
      %c0_28 = arith.constant 0 : index
      %35 = vector.load %arg5[%c0_26, %c0_27, %c0_28] : memref<1x8x128xf32, #tpu.memory_space<vmem>>, vector<1x8x128xf32>
      %36 = vector.shape_cast %35 : vector<1x8x128xf32> to vector<8x128xf32>
      %37 = vector.shape_cast %34 : vector<8x128xf32> to vector<1x8x128xf32>
      tpu.vector_store %arg5[%c0_26, %c0_27, %c0_28], %37 {strides = array<i32>} : memref<1x8x128xf32, #tpu.memory_space<vmem>>, vector<1x8x128xf32>,
    } else {
    }
    return
  }
  func.func @transform_0(%arg0: i32, %arg1: i32) -> (i32, i32) {
    %c1_i32 = arith.constant 1 : i32
    %0 = arith.muli %arg0, %c1_i32 : i32
    %1 = arith.addi %0, %arg1 : i32
    %c0_i32 = arith.constant 0 : i32
    %2 = arith.minsi %1, %c0_i32 : i32
    %c0_i32_0 = arith.constant 0 : i32
    %c0_i32_1 = arith.constant 0 : i32
    return %2, %c0_i32_0 : i32, i32
  }
  func.func @transform_1(%arg0: i32, %arg1: i32) -> (i32, i32) {
    %c1_i32 = arith.constant 1 : i32
    %0 = arith.muli %arg0, %c1_i32 : i32
    %1 = arith.addi %0, %arg1 : i32
    %c0_i32 = arith.constant 0 : i32
    %2 = arith.minsi %1, %c0_i32 : i32
    %c0_i32_0 = arith.constant 0 : i32
    %c0_i32_1 = arith.constant 0 : i32
    return %2, %c0_i32_0 : i32, i32
  }
  func.func @transform_2(%arg0: i32, %arg1: i32) -> (i32, i32, i32) {
    %c0_i32 = arith.constant 0 : i32
    %c0_i32_0 = arith.constant 0 : i32
    %c0_i32_1 = arith.constant 0 : i32
    return %arg0, %c0_i32, %c0_i32_0 : i32, i32, i32
  }
  func.func @transform_3(%arg0: i32, %arg1: i32) -> (i32, i32, i32) {
    %c0_i32 = arith.constant 0 : i32
    %c0_i32_0 = arith.constant 0 : i32
    %c0_i32_1 = arith.constant 0 : i32
    return %arg0, %c0_i32, %c0_i32_0 : i32, i32, i32
  }
}

</mosaic_0001>

<llo_original>
// kernel: tpu_custom_call.1
$region0: #{tpu_custom_call.1}
  #allocation0 [shape = 'u32[]', space=smem, size = 0x4, offset = 0x4, fixed_abs, tag = 'smem constant byte address 0x4 - core index']
  #allocation1 [shape = 'u32[144,128]{1,0:T(1,128)}', space=vmem, size = 0x12000, scoped, tag = 'internal scratch']
  #allocation2 [shape = 'f32[8,128]{1,0:T(8,128)}', space=vmem, size = 0x1000, scoped, tag = 'scratch operand']
  #allocation3 [shape = 'f32[8,128]{1,0:T(8,128)}', space=vmem, size = 0x1000, scoped, tag = 'scratch operand']
  %s0 = inlined_call_operand.hbm [shape: f32[16,128], index: 0, kind: input, shape index: {}]
  %s1 = inlined_call_operand.hbm [shape: f32[16,128], index: 1, kind: input, shape index: {}]
  %s2 = inlined_call_operand.hbm [shape: f32[1,8,128], index: 2, kind: output, shape index: {0}]
  %s3 = inlined_call_operand.hbm [shape: f32[1,8,128], index: 3, kind: output, shape index: {1}]
  %4 = xla_tuple %s2, %s3
  %s5 = sld [smem:[#allocation0]]
  $region42: #{tpu_custom_call.1} parent=0
    _
  %s7 = ssub.s32 1, %s5
  %s8 = scalar_select 0, %s7, %s5
  $region1: #{tpu_custom_call.1} parent=0
    #allocation4 [shape = 'u8[8192]{0}', space=vmem, size = 0x2000, scoped, tag = 'input window, operand 0, single buffered']
    #allocation5 [shape = 's32[1]{0}', space=sflag, size = 0x4, scoped, tag = 'scoped memory for tpu_custom_call.1']
    #allocation6 [shape = 's32[1]{0}', space=sflag, size = 0x4, scoped, tag = 'scoped memory for tpu_custom_call.1']
    #allocation7 [shape = 'u8[8192]{0}', space=vmem, size = 0x2000, scoped, tag = 'input window, operand 1, single buffered']
    #allocation8 [shape = 's32[1]{0}', space=sflag, size = 0x4, scoped, tag = 'scoped memory for tpu_custom_call.1']
    #allocation9 [shape = 'u8[4096]{0}', space=vmem, size = 0x1000, scoped, tag = 'output window, operand 0, single buffered']
    #allocation10 [shape = 'u8[4096]{0}', space=vmem, size = 0x1000, scoped, tag = 'output window, operand 1, single buffered']
    #allocation11 [shape = 's32[1]{0}', space=sflag, size = 0x4, scoped, tag = 'scoped memory for tpu_custom_call.1']
    %9 = vsyncpa [#allocation5], 0
    %10 = vsyncpa [#allocation8], 0
    %11 = vsyncpa [#allocation6], 0
    %12 = vsyncpa [#allocation11], 0
    // Predicated region
    $region2: #{tpu_custom_call.1} parent=1 // pred_check
      _
    $region3: #{tpu_custom_call.1} parent=1 // pred_check_branch
      %14 = sbr.rel (0) target = $region5
    $region4: #{tpu_custom_call.1} parent=1 // pred_region
      %s15 = sadd.s32 0, 0
      %p16 = scmp.lt.s32.totalorder %s15, 0
      %s17 = scalar_select %p16, %s15, 0
      %s18 = smul.u32 2, %s17
      %s20 = ssub.s32 256, 256
      %21 = vsyncadd [#allocation5], %s20
      %s22 = smul.addr %s18, 128
      %s23 = scalar_lea.hbm %s0, %s22
      %s24 = sshll.u32 [#allocation4], 4
      %s25 = int_to_ptr.vmem [resolvable:$true] %s24
      %30 = dma.hbm_to_vmem [thread:$0]  %s23, 256, %s25, [#allocation5], 128, 128, 8
    $region5: #{tpu_custom_call.1} parent=1 // pred_fallthru
      _
    // Predicated region
    $region6: #{tpu_custom_call.1} parent=1 // pred_check
      _
    $region7: #{tpu_custom_call.1} parent=1 // pred_check_branch
      %32 = sbr.rel (0) target = $region9
    $region8: #{tpu_custom_call.1} parent=1 // pred_region
      %s33 = sadd.s32 0, 0
      %p34 = scmp.lt.s32.totalorder %s33, 0
      %s35 = scalar_select %p34, %s33, 0
      %s36 = smul.u32 2, %s35
      %s38 = ssub.s32 256, 256
      %39 = vsyncadd [#allocation8], %s38
      %s40 = smul.addr %s36, 128
      %s41 = scalar_lea.hbm %s1, %s40
      %s42 = sshll.u32 [#allocation7], 4
      %s43 = int_to_ptr.vmem [resolvable:$true] %s42
      %48 = dma.hbm_to_vmem [thread:$0]  %s41, 256, %s43, [#allocation8], 128, 128, 8
    $region9: #{tpu_custom_call.1} parent=1 // pred_fallthru
      _
    // Predicated region
    $region10: #{tpu_custom_call.1} parent=1 // pred_check
      _
    $region11: #{tpu_custom_call.1} parent=1 // pred_check_branch
      %50 = sbr.rel (0) target = $region13
    $region12: #{tpu_custom_call.1} parent=1 // pred_region
      %51 = dma.done [#allocation5], 256
    $region13: #{tpu_custom_call.1} parent=1 // pred_fallthru
      _
    // Predicated region
    $region14: #{tpu_custom_call.1} parent=1 // pred_check
      _
    $region15: #{tpu_custom_call.1} parent=1 // pred_check_branch
      %53 = sbr.rel (0) target = $region17
    $region16: #{tpu_custom_call.1} parent=1 // pred_region
      %54 = dma.done [#allocation8], 256
    $region17: #{tpu_custom_call.1} parent=1 // pred_fallthru
      _
    %s55 = sadd.s32 0, 0
    %p56 = scmp.lt.s32.totalorder %s55, 0
    %s57 = scalar_select %p56, %s55, 0
    %s58 = smul.u32 2, %s57
    %s59 = sadd.s32 0, 0
    %p60 = scmp.lt.s32.totalorder %s59, 0
    %s61 = scalar_select %p60, %s59, 0
    %s62 = smul.u32 2, %s61
    %p63 = scmp.eq.s32.totalorder 0, 0
    // Predicated region
    $region18: #{tpu_custom_call.1} parent=1 // pred_check
      %p64 = pneg %p63
    $region19: #{tpu_custom_call.1} parent=1 // pred_check_branch
      %66 = sbr.rel (%p64) target = $region21
    $region20: #{tpu_custom_call.1} parent=1 // pred_region
      %67 = vst [vmem:[#allocation2] sm:$0xff] 0.0
      %68 = vst [vmem:[#allocation3] sm:$0xff] 0.0
    $region21: #{tpu_custom_call.1} parent=1 // pred_fallthru
      _
    %v69 = vld [vmem:[#allocation4] sm:$0xff]
    %v70 = vld [vmem:[#allocation4 + $0x8] sm:$0xff]
    %v71 = vld [vmem:[#allocation7] sm:$0xff]
    %v72 = vld [vmem:[#allocation7 + $0x8] sm:$0xff]
    %v73 = vsub.f32 %v69, %v71
    %v74 = vsub.f32 %v70, %v72
    %v75 = vand.u32 2147483647, %v73
    %v76 = vand.u32 2147483647, %v74
    %v77 = vld [vmem:[#allocation2] sm:$0xff]
    %v78 = vadd.f32 %v75, %v76
    %v79 = vadd.f32 %v77, %v78
    %80 = vst [vmem:[#allocation2] sm:$0xff] %v79
    %v81 = vmax.f32 %v69, 0.0
    %v82 = vmax.f32 %v70, 0.0
    %v83 = vmin.f32 %v81, 1.0
    %v84 = vmin.f32 %v82, 1.0
    %v85 = vmax.f32 %v71, 0.0
    %v86 = vmax.f32 %v72, 0.0
    %v87 = vmin.f32 %v85, 1.0
    %v88 = vmin.f32 %v86, 1.0
    %v89 = vsub.f32 %v83, %v87
    %v90 = vsub.f32 %v84, %v88
    %v91 = vand.u32 2147483647, %v89
    %v92 = vand.u32 2147483647, %v90
    %v93 = vld [vmem:[#allocation3] sm:$0xff]
    %v94 = vadd.f32 %v91, %v92
    %v95 = vadd.f32 %v93, %v94
    %96 = vst [vmem:[#allocation3] sm:$0xff] %v95
    // Predicated region
    $region22: #{tpu_custom_call.1} parent=1 // pred_check
      %p97 = pneg %p63
    $region23: #{tpu_custom_call.1} parent=1 // pred_check_branch
      %99 = sbr.rel (%p97) target = $region25
    $region24: #{tpu_custom_call.1} parent=1 // pred_region
      %v100 = vld [vmem:[#allocation2] sm:$0xff]
      %101 = vst [vmem:[#allocation9] sm:$0xff] %v100
      %v102 = vld [vmem:[#allocation3] sm:$0xff]
      %103 = vst [vmem:[#allocation10] sm:$0xff] %v102
    $region25: #{tpu_custom_call.1} parent=1 // pred_fallthru
      _
    // Predicated region
    $region26: #{tpu_custom_call.1} parent=1 // pred_check
      _
    $region27: #{tpu_custom_call.1} parent=1 // pred_check_branch
      %105 = sbr.rel (0) target = $region29
    $region28: #{tpu_custom_call.1} parent=1 // pred_region
      %s107 = ssub.s32 128, 128
      %108 = vsyncadd [#allocation6], %s107
      %s110 = sshll.u32 [#allocation9], 4
      %s111 = int_to_ptr.vmem [resolvable:$true] %s110
      %113 = dma.vmem_to_hbm [thread:$0]  %s111, 128, %s2, [#allocation6]
    $region29: #{tpu_custom_call.1} parent=1 // pred_fallthru
      _
    // Predicated region
    $region30: #{tpu_custom_call.1} parent=1 // pred_check
      _
    $region31: #{tpu_custom_call.1} parent=1 // pred_check_branch
      %115 = sbr.rel (0) target = $region33
    $region32: #{tpu_custom_call.1} parent=1 // pred_region
      %s117 = ssub.s32 128, 128
      %118 = vsyncadd [#allocation11], %s117
      %s120 = sshll.u32 [#allocation10], 4
      %s121 = int_to_ptr.vmem [resolvable:$true] %s120
      %123 = dma.vmem_to_hbm [thread:$0]  %s121, 128, %s3, [#allocation11]
    $region33: #{tpu_custom_call.1} parent=1 // pred_fallthru
      _
    // Predicated region
    $region34: #{tpu_custom_call.1} parent=1 // pred_check
      _
    $region35: #{tpu_custom_call.1} parent=1 // pred_check_branch
      %125 = sbr.rel (0) target = $region37
    $region36: #{tpu_custom_call.1} parent=1 // pred_region
      %126 = dma.done [#allocation6], 128
    $region37: #{tpu_custom_call.1} parent=1 // pred_fallthru
      _
    // Predicated region
    $region38: #{tpu_custom_call.1} parent=1 // pred_check
      _
    $region39: #{tpu_custom_call.1} parent=1 // pred_check_branch
      %128 = sbr.rel (0) target = $region41
    $region40: #{tpu_custom_call.1} parent=1 // pred_region
      %129 = dma.done [#allocation11], 128
    $region41: #{tpu_custom_call.1} parent=1 // pred_fallthru
      _
    %130 = vsyncpa [#allocation5], 1
    %131 = vsyncpa [#allocation8], 1
    %132 = vsyncpa [#allocation6], 1
    %133 = vsyncpa [#allocation11], 1

</llo_original>
